<compile_context>
chip_gen: v7x
topology: tpu7x:2x2x1
jax: 0.10.0
libtpu: 0.0.40
codegen_flags: <defaults>
</compile_context>

<pallas_src>
from collections import namedtuple

import numpy as np
import jax
import jax.numpy as jnp
from jax.experimental import pallas as pl
from jax.experimental.pallas import tpu as pltpu

Metadata = namedtuple("Metadata", ["file", "fake_periods"])

FPS = 25.0


def _round_up(x, m):
    return ((x + m - 1) // m) * m


# --------------------------------------------------------------------------
# Kernel 1: on-the-fly IoU + sequential greedy TP assignment (AP.get_values)
#   grid = (n_files,) "parallel"; ALL thresholds fused into one greedy pass.
#   Layout: labels in sublanes (l_pad rows), thresholds in lanes (n_thr cols)
#   so the per-iteration result is a (1, n_thr) row stored with a cheap
#   dynamic-sublane store.
# --------------------------------------------------------------------------
def make_values_kernel(l_pad, n_thr, inv_fps):
    def kernel(counts_ref, props_ref, labs_ref, thr_ref, is_tp_ref):
        f = pl.program_id(0)
        n_prop = counts_ref[f, 0]                      # real proposals (SMEM)
        n_lab = counts_ref[f, 1]                       # real labels    (SMEM)

        b_min = labs_ref[:, 0:1]                       # (l_pad, 1) label start [s]
        b_max = labs_ref[:, 1:2]                       # (l_pad, 1) label end   [s]
        lab_len = b_max - b_min
        sub_l = jax.lax.broadcasted_iota(jnp.int32, (l_pad, 1), 0)
        lab_valid = sub_l < n_lab                      # mask padded labels

        thr_row = thr_ref[...]                         # (1, n_thr)

        # padded proposals are never visited (loop bound n_prop) -> stay 0
        is_tp_ref[...] = jnp.zeros_like(is_tp_ref)

        def body(i, detected):                         # detected: (l_pad, n_thr)
            pr = props_ref[pl.ds(i, 1), :]             # (1, 2) frames
            a_min = pr[:, 0:1] * inv_fps               # (1, 1) seconds
            a_max = pr[:, 1:2] * inv_fps
            # iou_with_anchors (standard BSN/BMN definition used by the metric)
            inter = jnp.maximum(
                jnp.minimum(a_max, b_max) - jnp.maximum(a_min, b_min), 0.0)
            union = (a_max - a_min) - inter + lab_len
            iou = inter / union                        # (l_pad, 1)
            # NOTE: 0/0 -> NaN only for degenerate zero-length disjoint
            # intervals; NaN > thr is False, matching the reference.

            # greedy: first (lowest-index) free label with IoU > threshold,
            # independently per threshold column.
            avail = (iou > thr_row) & lab_valid & (detected < 0.5)
            first_j = jnp.min(jnp.where(avail, sub_l, l_pad),
                              axis=0, keepdims=True)   # (1, n_thr)
            detected = jnp.maximum(
                detected, jnp.where(sub_l == first_j, 1.0, 0.0))
            # O(1) dynamic row store of this proposal's is_TP for all thresholds
            is_tp_ref[pl.ds(i, 1), :] = jnp.where(first_j < l_pad, 1.0, 0.0)
            return detected

        detected0 = jnp.zeros((l_pad, n_thr), jnp.float32)
        jax.lax.fori_loop(0, n_prop, body, detected0)

    return kernel


def batched_get_values(metadata, proposals_dict, thresholds, fps=FPS):
    """One pallas_call for all files and all thresholds.
       Returns is_tp (n_files, p_pad, n_thr), the raw proposals and per-file
       proposal / label counts."""
    n_files = len(metadata)
    props = [np.asarray(proposals_dict[m.file], dtype=np.float32).reshape(-1, 3)
             for m in metadata]
    labs = [np.asarray(m.fake_periods, dtype=np.float32).reshape(-1, 2)
            for m in metadata]
    p_list = [int(p.shape[0]) for p in props]
    l_list = [int(l.shape[0]) for l in labs]

    p_pad = _round_up(max(max(p_list), 1), 8)
    l_pad = _round_up(max(max(l_list), 1), 8)
    n_thr = len(thresholds)

    # pad with intervals at [-2, -1] s: never overlap real data, non-zero
    # length (no 0/0); padded labels are additionally masked by n_lab.
    prop_iv = np.zeros((n_files, p_pad, 2), np.float32)
    prop_iv[..., 0] = -2.0 * fps
    prop_iv[..., 1] = -1.0 * fps
    lab_iv = np.zeros((n_files, l_pad, 2), np.float32)
    lab_iv[..., 0] = -2.0
    lab_iv[..., 1] = -1.0
    counts = np.zeros((n_files, 2), np.int32)
    for f in range(n_files):
        P, L = p_list[f], l_list[f]
        if P:
            prop_iv[f, :P, :] = props[f][:, 1:3]
        if L:
            lab_iv[f, :L, :] = labs[f]
        counts[f, 0] = P
        counts[f, 1] = L

    thr_row = np.asarray(thresholds, np.float32).reshape(1, n_thr)
    kernel = make_values_kernel(l_pad, n_thr, 1.0 / float(fps))
    is_tp = pl.pallas_call(
        kernel,
        grid_spec=pltpu.PrefetchScalarGridSpec(
            num_scalar_prefetch=1,
            grid=(n_files,),
            in_specs=[
                pl.BlockSpec((None, p_pad, 2), lambda f, c: (f, 0, 0)),
                pl.BlockSpec((None, l_pad, 2), lambda f, c: (f, 0, 0)),
                pl.BlockSpec((1, n_thr), lambda f, c: (0, 0)),
            ],
            out_specs=pl.BlockSpec((None, p_pad, n_thr), lambda f, c: (f, 0, 0)),
        ),
        out_shape=jax.ShapeDtypeStruct((n_files, p_pad, n_thr), jnp.float32),
        compiler_params=pltpu.CompilerParams(dimension_semantics=("parallel",)),
    )(jnp.asarray(counts), jnp.asarray(prop_iv), jnp.asarray(lab_iv),
      jnp.asarray(thr_row))

    return is_tp, props, p_list, l_list


# --------------------------------------------------------------------------
# Kernel 2: PR-curve + AP integration  (AP.calculate_curve / calculate_ap)
#   grid = (n_thr,) "parallel"; two-level scans:
#     prefix sum  : per-128-block MXU matmul + tiny sublane scan over block sums
#     suffix max  : 7 lane rolls per block + block-carry combine
# --------------------------------------------------------------------------
def make_ap_kernel(n_values, inv_n_labels, n_blocks):
    LB = 128

    def kernel(t_ref, ap_ref):
        t = t_ref[...]                                       # (n_blocks, 128)
        blk = jax.lax.broadcasted_iota(jnp.int32, (n_blocks, LB), 0)
        lane = jax.lax.broadcasted_iota(jnp.int32, (n_blocks, LB), 1)
        gidx = blk * LB + lane                               # global sorted index

        # (1) per-block inclusive prefix sum on the MXU: t @ U, U[i,j]=1 if i<=j
        r = jax.lax.broadcasted_iota(jnp.int32, (LB, LB), 0)
        c = jax.lax.broadcasted_iota(jnp.int32, (LB, LB), 1)
        upper = (r <= c).astype(jnp.float32)
        cum = jnp.dot(t, upper, preferred_element_type=jnp.float32)

        # (2) exclusive prefix sum of block totals (tiny sublane scan)
        bsum = cum[:, LB - 1:LB]                             # (n_blocks, 1)
        sub = jax.lax.broadcasted_iota(jnp.int32, (n_blocks, 1), 0)
        inc = bsum
        d = 1
        while d < n_blocks:
            sh = pltpu.roll(inc, shift=d, axis=0)
            inc = inc + jnp.where(sub >= d, sh, 0.0)
            d *= 2
        cum_full = cum + (inc - bsum)                        # global acc_TP

        # (3) precision_k = acc_TP_k / (k + 1); exact division (tolerance)
        rank = (gidx + 1).astype(jnp.float32)
        prec = jnp.where(gidx < n_values, cum_full / rank, 0.0)

        # (4) suffix max of precision: per-block lane scan + block carry
        m = prec
        d = 1
        while d < LB:
            sh = pltpu.roll(m, shift=LB - d, axis=1)         # row-local left roll
            m = jnp.maximum(m, jnp.where(lane < LB - d, sh, 0.0))
            d *= 2
        bmax = m[:, 0:1]                                     # per-block max
        sm = bmax
        d = 1
        while d < n_blocks:
            sh = pltpu.roll(sm, shift=n_blocks - d, axis=0)
            sm = jnp.maximum(sm, jnp.where(sub < n_blocks - d, sh, 0.0))
            d *= 2
        carry = pltpu.roll(sm, shift=n_blocks - 1, axis=0)   # = sm[b + 1]
        carry = jnp.where(sub < n_blocks - 1, carry, 0.0)
        suffmax = jnp.maximum(m, carry)                      # global suffix max

        # (5) ap = (1/n_labels) * sum_{1 <= k < n_values} is_TP_k * suffmax_k
        #     (the segment ending at the highest-confidence point never
        #      contributes, exactly as in the reference loop)
        w = jnp.where((gidx >= 1) & (gidx < n_values), t, 0.0)
        total = jnp.sum(w * suffmax, axis=1, keepdims=True)  # (n_blocks, 1)
        total = jnp.sum(total, axis=0, keepdims=True)        # (1, 1)
        ap_ref[...] = (total * inv_n_labels) * jnp.ones((1, LB), jnp.float32)

    return kernel


def ap_batch_pallas(t_mat, n_values, n_labels):
    """t_mat: (n_thr, n_blocks, 128) confidence-sorted is_TP; returns (n_thr,)."""
    n_thr, n_blocks, _ = (int(s) for s in t_mat.shape)
    kernel = make_ap_kernel(int(n_values), 1.0 / float(n_labels), n_blocks)
    out = pl.pallas_call(
        kernel,
        grid=(n_thr,),
        in_specs=[pl.BlockSpec((None, n_blocks, 128), lambda t: (t, 0, 0))],
        out_specs=pl.BlockSpec((None, 1, 128), lambda t: (t, 0, 0)),
        out_shape=jax.ShapeDtypeStruct((n_thr, 1, 128), jnp.float32),
        compiler_params=pltpu.CompilerParams(dimension_semantics=("parallel",)),
    )(t_mat)
    return out[:, 0, 0]


# --------------------------------------------------------------------------
# AP module (forward-pass equivalent of the PyTorch class)
# --------------------------------------------------------------------------
class APPallas:
    def __init__(self, iou_thresholds=0.5):
        self.iou_thresholds = (iou_thresholds if isinstance(iou_thresholds, list)
                               else [iou_thresholds])
        self.n_labels = 0
        self.ap = {}

    def __call__(self, metadata, proposals_dict):
        thresholds = [float(t) for t in self.iou_thresholds]
        n_thr = len(thresholds)

        # one batched launch for all files x thresholds
        is_tp, props, p_list, l_list = batched_get_values(
            metadata, proposals_dict, thresholds, FPS)
        self.n_labels = int(sum(l_list))
        N = int(sum(p_list))

        if N == 0 or self.n_labels == 0:
            # the reference divides by zero here; return 0 AP instead.
            self.ap = {thr: 0.0 for thr in self.iou_thresholds}
            return self.ap

        # TODO(synk): the stable descending confidence sort and the flat
        # gather-index construction are host-side glue (numpy); Pallas TPU
        # has no clean sort primitive.
        p_pad = int(is_tp.shape[1])
        conf_all = np.concatenate([p[:, 0] for p in props if p.shape[0]])
        flat_idx = np.concatenate(
            [f * p_pad + np.arange(p_list[f], dtype=np.int64)
             for f in range(len(props))]).astype(np.int32)
        order = np.argsort(-conf_all, kind="stable")
        gather_idx = jnp.asarray(flat_idx[order])

        n_pad = _round_up(N, 1024)                 # -> n_blocks multiple of 8
        n_blocks = n_pad // 128

        flat = is_tp.reshape(-1, n_thr)                      # (n_files*p_pad, n_thr)
        sel = jnp.take(flat, gather_idx, axis=0)             # one flat gather
        t_mat = jnp.zeros((n_pad, n_thr), jnp.float32).at[:N, :].set(sel)
        t_mat = t_mat.T.reshape(n_thr, n_blocks, 128)

        ap_vals = np.asarray(jax.device_get(
            ap_batch_pallas(t_mat, N, self.n_labels)))
        self.ap = {thr: float(ap_vals[t])
                   for t, thr in enumerate(self.iou_thresholds)}
        return self.ap


# --------------------------------------------------------------------------
# Pure-numpy reference (faithful port of the PyTorch code) for self-check
# --------------------------------------------------------------------------
def _ref_get_values(thr, proposals, labels, fps):
    proposals = np.asarray(proposals, dtype=np.float64)
    labels = np.asarray(labels, dtype=np.float64)
    n_labels = len(labels)
    a_min = proposals[:, 1] / fps
    a_max = proposals[:, 2] / fps
    ious = np.zeros((len(proposals), n_labels))
    for i in range(n_labels):
        inter = np.maximum(np.minimum(a_max, labels[i, 1]) - np.maximum(a_min, labels[i, 0]), 0.0)
        union = (a_max - a_min) - inter + (labels[i, 1] - labels[i, 0])
        ious[:, i] = inter / union
    detected = np.zeros(n_labels, dtype=bool)
    pot = ious > thr
    for i in range(len(proposals)):
        for j in range(n_labels):
            if pot[i, j]:
                if detected[j]:
                    pot[i, j] = False
                else:
                    pot[i, :] = False
                    pot[i, j] = True
                    detected[j] = True
    is_tp = pot.any(axis=1)
    return np.column_stack([proposals[:, 0], is_tp.astype(np.float64)])


def _ref_ap(metadata, proposals_dict, iou_thresholds, fps=FPS):
    out = {}
    for thr in iou_thresholds:
        vals, n_labels = [], 0
        for meta in metadata:
            vals.append(_ref_get_values(thr, proposals_dict[meta.file], meta.fake_periods, fps))
            n_labels += len(np.asarray(meta.fake_periods))
        values = np.concatenate(vals, axis=0)
        order = np.argsort(-values[:, 0], kind="stable")
        values = values[order]
        acc_TP = acc_FP = 0
        curve = np.zeros((len(values), 2))
        for i, (_, is_tp) in enumerate(values):
            if is_tp == 1:
                acc_TP += 1
            else:
                acc_FP += 1
            curve[i] = (acc_TP / n_labels, acc_TP / (acc_TP + acc_FP))
        curve = np.concatenate([np.array([[1.0, 0.0]]), curve[::-1]], axis=0)
        y_max, ap = 0.0, 0.0
        for i in range(len(curve) - 1):
            x1, y1 = curve[i]
            x2, _ = curve[i + 1]
            if y1 > y_max:
                y_max = y1
            ap += (x1 - x2) * y_max
        out[thr] = ap
    return out


# --------------------------------------------------------------------------
def make_example_data(key, n_files=2, n_labels=3, n_props=8, fps=FPS):
    metadata, proposals_dict = [], {}
    for fi in range(n_files):
        key, k1, k2, k3, k4, k5 = jax.random.split(key, 6)
        starts = jax.random.uniform(k1, (n_labels,), minval=0.0, maxval=8.0)
        durs = jax.random.uniform(k2, (n_labels,), minval=1.0, maxval=3.0)
        labels = jnp.stack([starts, starts + durs], axis=1)            # seconds
        conf = jax.random.uniform(k3, (n_props,), minval=0.05, maxval=0.99)
        jitter = jax.random.uniform(k4, (n_labels, 2), minval=-0.15, maxval=0.15)
        matched = (labels + jitter) * fps                              # frames
        rs = jax.random.uniform(k5, (n_props - n_labels,), minval=0.0, maxval=10.0) * fps
        rd = jnp.linspace(0.6, 2.5, n_props - n_labels) * fps
        random_props = jnp.stack([rs, rs + rd], axis=1)
        intervals = jnp.concatenate([matched, random_props], axis=0)
        props = jnp.concatenate([conf[:, None], intervals], axis=1)    # (n_props, 3)
        name = f"file_{fi}"
        metadata.append(Metadata(file=name, fake_periods=labels))
        proposals_dict[name] = props
    return metadata, proposals_dict


if __name__ == "__main__":
    key = jax.random.PRNGKey(0)
    metadata, proposals_dict = make_example_data(key)

    thresholds = [0.5, 0.75]
    metric = APPallas(thresholds)
    result = metric(metadata, proposals_dict)
    jax.block_until_ready(result)

    ref = _ref_ap(metadata, proposals_dict, thresholds, FPS)
    for thr in thresholds:
        assert abs(float(result[thr]) - float(ref[thr])) < 1e-4, (
            thr, float(result[thr]), float(ref[thr]))

    print("KERNEL_OK")
</pallas_src>

<mosaic_0001>
module attributes {stable_mosaic.version = 11 : i64} {
  func.func @kernel(%arg0: i32, %arg1: memref<2x2xi32, #tpu.memory_space<smem>>, %arg2: memref<1x8x2xf32, #tpu.memory_space<vmem>>, %arg3: memref<1x8x2xf32, #tpu.memory_space<vmem>>, %arg4: memref<1x2xf32, #tpu.memory_space<vmem>>, %arg5: memref<1x8x2xf32, #tpu.memory_space<vmem>>) attributes {dimension_semantics = [#tpu.dimension_semantics<parallel>], iteration_bounds = array<i64: 2>, scalar_prefetch = 1 : i64, scratch_operands = 0 : i64, tpu.core_type = #tpu.core_type<tc>, window_params = [{transform_indices = @transform_0, window_bounds = array<i64: 1, 8, 2>}, {transform_indices = @transform_1, window_bounds = array<i64: 1, 8, 2>}, {pipeline_mode = #tpu.pipeline_mode<synchronous>, transform_indices = @transform_2, window_bounds = array<i64: 1, 2>}, {transform_indices = @transform_3, window_bounds = array<i64: 1, 8, 2>}]} {
    %0 = arith.index_cast %arg0 : i32 to index
    %c0 = arith.constant 0 : index
    %1 = memref.load %arg1[%0, %c0] : memref<2x2xi32, #tpu.memory_space<smem>>
    %2 = arith.index_cast %arg0 : i32 to index
    %c1 = arith.constant 1 : index
    %3 = memref.load %arg1[%2, %c1] : memref<2x2xi32, #tpu.memory_space<smem>>
    %c0_0 = arith.constant 0 : index
    %c0_1 = arith.constant 0 : index
    %c0_2 = arith.constant 0 : index
    %4 = vector.load %arg3[%c0_0, %c0_1, %c0_2] : memref<1x8x2xf32, #tpu.memory_space<vmem>>, vector<1x8x1xf32>
    %5 = vector.shape_cast %4 : vector<1x8x1xf32> to vector<8x1xf32>
    %c0_3 = arith.constant 0 : index
    %c0_4 = arith.constant 0 : index
    %c1_5 = arith.constant 1 : index
    %6 = vector.load %arg3[%c0_3, %c0_4, %c1_5] : memref<1x8x2xf32, #tpu.memory_space<vmem>>, vector<1x8x1xf32>
    %7 = vector.shape_cast %6 : vector<1x8x1xf32> to vector<8x1xf32>
    %8 = arith.subf %7, %5 : vector<8x1xf32>
    %9 = tpu.iota {dimensions = array<i32: 0>} : vector<8x1xi32>
    %10 = vector.broadcast %3 : i32 to vector<8x1xi32>
    %11 = arith.cmpi slt, %9, %10 : vector<8x1xi32>
    %c0_6 = arith.constant 0 : index
    %c0_7 = arith.constant 0 : index
    %12 = vector.load %arg4[%c0_6, %c0_7] : memref<1x2xf32, #tpu.memory_space<vmem>>, vector<1x2xf32>
    %cst = arith.constant 0.000000e+00 : f32
    %13 = vector.broadcast %cst : f32 to vector<8x2xf32>
    %c0_8 = arith.constant 0 : index
    %c0_9 = arith.constant 0 : index
    %c0_10 = arith.constant 0 : index
    %14 = vector.load %arg5[%c0_8, %c0_9, %c0_10] : memref<1x8x2xf32, #tpu.memory_space<vmem>>, vector<1x8x2xf32>
    %15 = vector.shape_cast %14 : vector<1x8x2xf32> to vector<8x2xf32>
    %16 = vector.shape_cast %13 : vector<8x2xf32> to vector<1x8x2xf32>
    tpu.vector_store %arg5[%c0_8, %c0_9, %c0_10], %16 {strides = array<i32>} : memref<1x8x2xf32, #tpu.memory_space<vmem>>, vector<1x8x2xf32>,
    %cst_11 = arith.constant 0.000000e+00 : f32
    %17 = vector.broadcast %cst_11 : f32 to vector<8x2xf32>
    %c0_i32 = arith.constant 0 : i32
    %18 = arith.subi %1, %c0_i32 : i32
    %19 = arith.addi %c0_i32, %18 : i32
    %c1_i32 = arith.constant 1 : i32
    %20 = scf.for %arg6 = %c0_i32 to %19 step %c1_i32 iter_args(%arg7 = %17) -> (vector<8x2xf32>)  : i32 {
      %c0_12 = arith.constant 0 : index
      %21 = arith.index_cast %arg6 : i32 to index
      %c0_13 = arith.constant 0 : index
      %22 = vector.load %arg2[%c0_12, %21, %c0_13] : memref<1x8x2xf32, #tpu.memory_space<vmem>>, vector<1x1x2xf32>
      %23 = vector.shape_cast %22 : vector<1x1x2xf32> to vector<1x2xf32>
      %24 = vector.extract_strided_slice %23 {offsets = [0, 0], sizes = [1, 1], strides = [1, 1]} : vector<1x2xf32> to vector<1x1xf32>
      %cst_14 = arith.constant 4.000000e-02 : f32
      %25 = vector.broadcast %cst_14 : f32 to vector<1x1xf32>
      %26 = arith.mulf %24, %25 : vector<1x1xf32>
      %27 = vector.extract_strided_slice %23 {offsets = [0, 1], sizes = [1, 1], strides = [1, 1]} : vector<1x2xf32> to vector<1x1xf32>
      %cst_15 = arith.constant 4.000000e-02 : f32
      %28 = vector.broadcast %cst_15 : f32 to vector<1x1xf32>
      %29 = arith.mulf %27, %28 : vector<1x1xf32>
      %30 = vector.broadcast %29 : vector<1x1xf32> to vector<8x1xf32>
      %31 = arith.minimumf %30, %7 : vector<8x1xf32>
      %32 = vector.broadcast %26 : vector<1x1xf32> to vector<8x1xf32>
      %33 = arith.maximumf %32, %5 : vector<8x1xf32>
      %34 = arith.subf %31, %33 : vector<8x1xf32>
      %cst_16 = arith.constant 0.000000e+00 : f32
      %35 = vector.broadcast %cst_16 : f32 to vector<8x1xf32>
      %36 = arith.maximumf %34, %35 : vector<8x1xf32>
      %37 = arith.subf %29, %26 : vector<1x1xf32>
      %38 = vector.broadcast %37 : vector<1x1xf32> to vector<8x1xf32>
      %39 = arith.subf %38, %36 : vector<8x1xf32>
      %40 = arith.addf %39, %8 : vector<8x1xf32>
      %41 = arith.divf %36, %40 : vector<8x1xf32>
      %42 = vector.broadcast %41 : vector<8x1xf32> to vector<8x2xf32>
      %43 = vector.broadcast %12 : vector<1x2xf32> to vector<8x2xf32>
      %44 = arith.cmpf ogt, %42, %43 : vector<8x2xf32>
      %45 = vector.broadcast %11 : vector<8x1xi1> to vector<8x2xi1>
      %46 = arith.andi %44, %45 : vector<8x2xi1>
      %cst_17 = arith.constant 5.000000e-01 : f32
      %47 = vector.broadcast %cst_17 : f32 to vector<8x2xf32>
      %48 = arith.cmpf olt, %arg7, %47 : vector<8x2xf32>
      %49 = arith.andi %46, %48 : vector<8x2xi1>
      %c8_i32 = arith.constant 8 : i32
      %50 = vector.shape_cast %9 : vector<8x1xi32> to vector<8x1xi32>
      %51 = vector.broadcast %50 : vector<8x1xi32> to vector<8x2xi32>
      %52 = vector.broadcast %c8_i32 : i32 to vector<8x2xi32>
      %53 = arith.select %49, %51, %52 : vector<8x2xi1>, vector<8x2xi32>
      %cst_18 = arith.constant dense<2147483647> : vector<2xi32>
      %54 = vector.multi_reduction <minsi>, %53, %cst_18 [0] : vector<8x2xi32> to vector<2xi32>
      %55 = vector.shape_cast %54 : vector<2xi32> to vector<1x2xi32>
      %56 = vector.broadcast %9 : vector<8x1xi32> to vector<8x2xi32>
      %57 = vector.broadcast %55 : vector<1x2xi32> to vector<8x2xi32>
      %58 = arith.cmpi eq, %56, %57 : vector<8x2xi32>
      %cst_19 = arith.constant 1.000000e+00 : f32
      %cst_20 = arith.constant 0.000000e+00 : f32
      %59 = vector.broadcast %cst_19 : f32 to vector<8x2xf32>
      %60 = vector.broadcast %cst_20 : f32 to vector<8x2xf32>
      %61 = arith.select %58, %59, %60 : vector<8x2xi1>, vector<8x2xf32>
      %62 = arith.maximumf %arg7, %61 : vector<8x2xf32>
      %c8_i32_21 = arith.constant 8 : i32
      %63 = vector.broadcast %c8_i32_21 : i32 to vector<1x2xi32>
      %64 = arith.cmpi slt, %55, %63 : vector<1x2xi32>
      %cst_22 = arith.constant 1.000000e+00 : f32
      %cst_23 = arith.constant 0.000000e+00 : f32
      %65 = vector.broadcast %cst_22 : f32 to vector<1x2xf32>
      %66 = vector.broadcast %cst_23 : f32 to vector<1x2xf32>
      %67 = arith.select %64, %65, %66 : vector<1x2xi1>, vector<1x2xf32>
      %c0_24 = arith.constant 0 : index
      %68 = arith.index_cast %arg6 : i32 to index
      %c0_25 = arith.constant 0 : index
      %69 = vector.load %arg5[%c0_24, %68, %c0_25] : memref<1x8x2xf32, #tpu.memory_space<vmem>>, vector<1x1x2xf32>
      %70 = vector.shape_cast %69 : vector<1x1x2xf32> to vector<1x2xf32>
      %71 = vector.shape_cast %67 : vector<1x2xf32> to vector<1x1x2xf32>
      tpu.vector_store %arg5[%c0_24, %68, %c0_25], %71 {strides = array<i32>} : memref<1x8x2xf32, #tpu.memory_space<vmem>>, vector<1x1x2xf32>,
      scf.yield %62 : vector<8x2xf32>
    }
    return
  }
  func.func @transform_0(%arg0: i32, %arg1: memref<2x2xi32, #tpu.memory_space<smem>>) -> (i32, i32, i32) {
    %c0_i32 = arith.constant 0 : i32
    %c0_i32_0 = arith.constant 0 : i32
    %c0_i32_1 = arith.constant 0 : i32
    return %arg0, %c0_i32, %c0_i32_0 : i32, i32, i32
  }
  func.func @transform_1(%arg0: i32, %arg1: memref<2x2xi32, #tpu.memory_space<smem>>) -> (i32, i32, i32) {
    %c0_i32 = arith.constant 0 : i32
    %c0_i32_0 = arith.constant 0 : i32
    %c0_i32_1 = arith.constant 0 : i32
    return %arg0, %c0_i32, %c0_i32_0 : i32, i32, i32
  }
  func.func @transform_2(%arg0: i32, %arg1: memref<2x2xi32, #tpu.memory_space<smem>>) -> (i32, i32) {
    %c0_i32 = arith.constant 0 : i32
    %c0_i32_0 = arith.constant 0 : i32
    %c0_i32_1 = arith.constant 0 : i32
    return %c0_i32, %c0_i32_0 : i32, i32
  }
  func.func @transform_3(%arg0: i32, %arg1: memref<2x2xi32, #tpu.memory_space<smem>>) -> (i32, i32, i32) {
    %c0_i32 = arith.constant 0 : i32
    %c0_i32_0 = arith.constant 0 : i32
    %c0_i32_1 = arith.constant 0 : i32
    return %arg0, %c0_i32, %c0_i32_0 : i32, i32, i32
  }
}

</mosaic_0001>

<llo_original>
// kernel: tpu_custom_call.1
$region0: #{tpu_custom_call.1}
  #allocation0 [shape = 'u32[]', space=smem, size = 0x4, offset = 0x4, fixed_abs, tag = 'smem constant byte address 0x4 - core index']
  #allocation1 [shape = 'u32[144,128]{1,0:T(1,128)}', space=vmem, size = 0x12000, scoped, tag = 'internal scratch']
  #allocation2 [shape = 's32[1]{0}', space=sflag, size = 0x4, scoped, tag = 'scoped memory for tpu_custom_call.1']
  #allocation3 [shape = 'u8[1024]{0}', space=smem, size = 0x400, scoped, tag = 'prefetched SMEM operand 0']
  %s0 = inlined_call_operand.vmem [shape: s32[2,2], index: 0, kind: input, shape index: {}]
  %s1 = inlined_call_operand.vmem [shape: f32[2,8,2], index: 1, kind: input, shape index: {}]
  %s2 = inlined_call_operand.vmem [shape: f32[2,8,2], index: 2, kind: input, shape index: {}]
  %s3 = inlined_call_operand.vmem [shape: f32[1,2], index: 3, kind: input, shape index: {}]
  %s4 = inlined_call_operand.vmem [shape: f32[2,8,2], index: 4, kind: output, shape index: {}]
  %s5 = sld [smem:[#allocation0]]
  $region52: #{tpu_custom_call.1} parent=0
    _
  %s7 = ssub.s32 1, %s5
  %s8 = scalar_select 0, %s7, %s5
  %s9 = sshll.u32 %s0, 4
  %s10 = int_to_ptr.vmem [resolvable:$true] %s9
  %12 = dma.vmem_to_smem %s10, 32, [#allocation3], [#allocation2]
  %13 = dma.done [#allocation2], 32
  %14 = sfence
  loop: start=0, step=1, limit=4
  $region2: #{tpu_custom_call.1} parent=0 // loop_pre_header
    _
  $region3: #{tpu_custom_call.1} parent=0 // loop_header
    %s16 = sphi 0, %s20
    %p17 = scmp.ge.s32.totalorder %s16, 4
    %s26 = sphi 0, %s28
    %s29 = sphi 0, %s26
    %s30 = sphi 0, %s29
    %s46 = sphi 0, %s30
    %s52 = sphi 0, %s54
    %s55 = sphi 0, %s52
    %s56 = sphi 0, %s55
    %s72 = sphi 0, %s56
    %s76 = sphi 0, %s76
    %s78 = sphi 0, %s76
    %s79 = sphi 0, %s78
    %s93 = sphi 0, %s79
    %s99 = sphi 0, %s101
    %s102 = sphi 0, %s99
    %s103 = sphi 0, %s102
    %s119 = sphi 0, %s103
  $region4: #{tpu_custom_call.1} parent=0 // loop_header_branch
    %19 = sbr.rel (%p17) target = $region8
  $region5: #{tpu_custom_call.1} parent=0 // loop_body
    %s21 = ssub.s32 %s16, 1
    %s22 = ssub.s32 %s16, 2
    %s23 = sadd.s32 %s16, 1
    %s24 = ssub.s32 %s16, %s23
    %p25 = scmp.eq.s32.totalorder %s24, 0
    %s27 = sadd.s32 %s26, 1
    %s28 = scalar_select %p25, %s26, %s27
    %p31 = pneg %p25
    %p32 = scmp.eq.s32.totalorder %s16, 1
    %p33 = por %p31, %p32
    %p34 = scmp.ne.s32.totalorder %s26, %s29
    %p35 = scmp.eq.s32.totalorder %s16, 0
    %p36 = por %p34, %p35
    %p37 = scmp.ne.s32.totalorder %s26, %s29
    %p38 = scmp.eq.s32.totalorder %s21, 1
    %p39 = por %p37, %p38
    %p40 = scmp.ne.s32.totalorder %s29, %s30
    %p41 = scmp.eq.s32.totalorder %s21, 0
    %p42 = por %p40, %p41
    %p43 = scmp.ne.s32.totalorder %s29, %s30
    %p44 = scmp.eq.s32.totalorder %s22, 1
    %p45 = por %p43, %p44
    %p47 = scmp.ne.s32.totalorder %s30, %s46
    %p48 = scmp.eq.s32.totalorder %s22, 0
    %p49 = por %p47, %p48
    %s50 = ssub.s32 %s16, %s23
    %p51 = scmp.eq.s32.totalorder %s50, 0
    %s53 = sadd.s32 %s52, 1
    %s54 = scalar_select %p51, %s52, %s53
    %p57 = pneg %p51
    %p58 = scmp.eq.s32.totalorder %s16, 1
    %p59 = por %p57, %p58
    %p60 = scmp.ne.s32.totalorder %s52, %s55
    %p61 = scmp.eq.s32.totalorder %s16, 0
    %p62 = por %p60, %p61
    %p63 = scmp.ne.s32.totalorder %s52, %s55
    %p64 = scmp.eq.s32.totalorder %s21, 1
    %p65 = por %p63, %p64
    %p66 = scmp.ne.s32.totalorder %s55, %s56
    %p67 = scmp.eq.s32.totalorder %s21, 0
    %p68 = por %p66, %p67
    %p69 = scmp.ne.s32.totalorder %s55, %s56
    %p70 = scmp.eq.s32.totalorder %s22, 1
    %p71 = por %p69, %p70
    %p73 = scmp.ne.s32.totalorder %s56, %s72
    %p74 = scmp.eq.s32.totalorder %s22, 0
    %p75 = por %p73, %p74
    %s77 = sadd.s32 %s76, 1
    %p80 = scmp.eq.s32.totalorder %s16, 1
    %p81 = scmp.ne.s32.totalorder %s76, %s78
    %p82 = scmp.eq.s32.totalorder %s16, 0
    %p83 = por %p81, %p82
    %p84 = scmp.ne.s32.totalorder %s76, %s78
    %p85 = scmp.eq.s32.totalorder %s21, 1
    %p86 = por %p84, %p85
    %p87 = scmp.ne.s32.totalorder %s78, %s79
    %p88 = scmp.eq.s32.totalorder %s21, 0
    %p89 = por %p87, %p88
    %p90 = scmp.ne.s32.totalorder %s78, %s79
    %p91 = scmp.eq.s32.totalorder %s22, 1
    %p92 = por %p90, %p91
    %p94 = scmp.ne.s32.totalorder %s79, %s93
    %p95 = scmp.eq.s32.totalorder %s22, 0
    %p96 = por %p94, %p95
    %s97 = ssub.s32 %s16, %s23
    %p98 = scmp.eq.s32.totalorder %s97, 0
    %s100 = sadd.s32 %s99, 1
    %s101 = scalar_select %p98, %s99, %s100
    %p104 = pneg %p98
    %p105 = scmp.eq.s32.totalorder %s16, 1
    %p106 = por %p104, %p105
    %p107 = scmp.ne.s32.totalorder %s99, %s102
    %p108 = scmp.eq.s32.totalorder %s16, 0
    %p109 = por %p107, %p108
    %p110 = scmp.ne.s32.totalorder %s99, %s102
    %p111 = scmp.eq.s32.totalorder %s21, 1
    %p112 = por %p110, %p111
    %p113 = scmp.ne.s32.totalorder %s102, %s103
    %p114 = scmp.eq.s32.totalorder %s21, 0
    %p115 = por %p113, %p114
    %p116 = scmp.ne.s32.totalorder %s102, %s103
    %p117 = scmp.eq.s32.totalorder %s22, 1
    %p118 = por %p116, %p117
    %p120 = scmp.ne.s32.totalorder %s103, %s119
    %p121 = scmp.eq.s32.totalorder %s22, 0
    %p122 = por %p120, %p121
    %p123 = scmp.le.s32.totalorder 1, %s16
    %p124 = scmp.lt.s32.totalorder %s16, 3
    %p125 = pnand %p123, %p124
    %p126 = pneg %p125
    // Predicated region
    $region9: #{tpu_custom_call.1} parent=5 // pred_check
      _
    $region10: #{tpu_custom_call.1} parent=5 // pred_check_branch
      %128 = sbr.rel (%p125) target = $region12
    $region11: #{tpu_custom_call.1} parent=5 // pred_region
      %s129 = ssub.s32 %s16, 1
      // Predicated region
      $region13: #{tpu_custom_call.1} parent=11 // pred_check
        %p130 = pneg %p89
      $region14: #{tpu_custom_call.1} parent=11 // pred_check_branch
        %132 = sbr.rel (%p130) target = $region16
      $region15: #{tpu_custom_call.1} parent=11 // pred_region
        _
      $region16: #{tpu_custom_call.1} parent=11 // pred_fallthru
        _
    $region12: #{tpu_custom_call.1} parent=5 // pred_fallthru
      _
    %p133 = scmp.lt.s32.totalorder %s16, 2
    // Predicated region
    $region17: #{tpu_custom_call.1} parent=5 // pred_check
      %p134 = pneg %p133
    $region18: #{tpu_custom_call.1} parent=5 // pred_check_branch
      %136 = sbr.rel (%p134) target = $region20
    $region19: #{tpu_custom_call.1} parent=5 // pred_region
      // Predicated region
      $region21: #{tpu_custom_call.1} parent=19 // pred_check
        %p137 = pneg %p36
      $region22: #{tpu_custom_call.1} parent=19 // pred_check_branch
        %139 = sbr.rel (%p137) target = $region24
      $region23: #{tpu_custom_call.1} parent=19 // pred_region
        %p140 = scmp.lt.s32.totalorder %s16, 1
        %s141 = scalar_select %p140, %s16, 1
        %s142 = smul.addr %s141, 8
        %s143 = scalar_lea.vmem %s1, %s142
      $region24: #{tpu_custom_call.1} parent=19 // pred_fallthru
        _
      // Predicated region
      $region25: #{tpu_custom_call.1} parent=19 // pred_check
        %p144 = pneg %p62
      $region26: #{tpu_custom_call.1} parent=19 // pred_check_branch
        %146 = sbr.rel (%p144) target = $region28
      $region27: #{tpu_custom_call.1} parent=19 // pred_region
        %p147 = scmp.lt.s32.totalorder %s16, 1
        %s148 = scalar_select %p147, %s16, 1
        %s149 = smul.addr %s148, 8
        %s150 = scalar_lea.vmem %s2, %s149
      $region28: #{tpu_custom_call.1} parent=19 // pred_fallthru
        _
    $region20: #{tpu_custom_call.1} parent=5 // pred_fallthru
      _
    %p151 = scmp.le.s32.totalorder 1, %s16
    %p152 = scmp.lt.s32.totalorder %s16, 3
    %p153 = pnand %p151, %p152
    %p154 = pneg %p153
    // Predicated region
    $region29: #{tpu_custom_call.1} parent=5 // pred_check
      _
    $region30: #{tpu_custom_call.1} parent=5 // pred_check_branch
      %156 = sbr.rel (%p153) target = $region32
    $region31: #{tpu_custom_call.1} parent=5 // pred_region
      %s157 = ssub.s32 %s16, 1
      %p158 = scmp.lt.s32.totalorder %s21, 1
      %s159 = scalar_select %p158, %s21, 1
      %s160 = smul.addr %s159, 8
      %s161 = scalar_lea.vmem %s1, %s160
      %p162 = pneg %p42
      %p163 = pneg %p39
      %p164 = scmp.lt.s32.totalorder %s21, 1
      %s165 = scalar_select %p164, %s21, 1
      %s166 = smul.addr %s165, 8
      %s167 = scalar_lea.vmem %s2, %s166
      %p168 = pneg %p68
      %p169 = pneg %p65
      %p170 = pneg %p89
      %p171 = pneg %p86
      %p172 = pneg %p115
      %p173 = pneg %p112
      %p174 = scmp.lt.s32.totalorder %s21, 1
      %s175 = scalar_select %p174, %s21, 1
      %s176 = smul.addr %s175, 8
      %s177 = scalar_lea.vmem %s4, %s176
      %p178 = scmp.lt.s32.totalorder %s21, 1
      %s179 = scalar_select %p178, %s21, 1
      %s180 = smul.addr %s179, 8
      %s181 = scalar_lea.vmem %s1, %s180
      %p182 = scmp.lt.s32.totalorder %s21, 1
      %s183 = scalar_select %p182, %s21, 1
      %s184 = smul.addr %s183, 8
      %s185 = scalar_lea.vmem %s2, %s184
      %p186 = scmp.lt.s32.totalorder %s21, 1
      %s187 = scalar_select %p186, %s21, 1
      %s188 = smul.addr %s187, 8
      %s189 = scalar_lea.vmem %s4, %s188
      %s190 = smul.u32 %s21, 128
      %s191 = sld [smem:[#allocation3 + %s190]]
      %s192 = sadd.s32 %s190, 1
      %s193 = sld [smem:[#allocation3 + %s192]]
      %v194 = vld [vmem:[%s185] sm:$0xff]
      %196 = vrot.lane.b32.xlu0 %v194, 1
      %v197 = vpop.permute.xlu0 %196
      %v199 = vsub.f32 %v194, %v197
      %v200 = vlaneseq
      %v201 = vshrl.u32 %v200, 7
      %v202 = vstv %s193
      %vm203 = vcmp.lt.s32.totalorder %v201, %v202
      %v204 = vld [vmem:[%s3] sm:$0x1]
      %vm205 = vcmask 15360
      %206 = vst.msk [vmem:[%s189] sm:$0xff] %vm205, 0.0
      // While loop
      $region33: #{tpu_custom_call.1} parent=31 // loop_pre_header
        _
      $region34: #{tpu_custom_call.1} parent=31 // loop_header
        %s208 = sphi 0, %s210
        %p209 = scmp.ge.s32.totalorder %s208, %s191
        %v213 = vphi 0.0, %v272
      $region35: #{tpu_custom_call.1} parent=31 // loop_header_branch
        %212 = sbr.rel (%p209) target = $region39
      $region36: #{tpu_custom_call.1} parent=31 // loop_body
        %s214 = scalar_lea.vmem %s181, %s208
        %v215 = vld [vmem:[%s214] sm:$0x1]
        %v216 = vmul.f32 %v215, 0.04
        %v217 = vlaneseq
        %v218 = vshrl.u32 %v217, 7
        %v219 = vsub.s32 0, %v218
        %v220 = vrot.slane %v216, %v219
        %v221 = vmin.f32 %v220, %v194
        %v222 = vmax.f32 %v220, %v194
        %224 = vrot.lane.b32.xlu0 %v222, 1
        %v225 = vpop.permute.xlu0 %224
        %v227 = vsub.f32 %v221, %v225
        %v228 = vmax.f32 %v227, 0.0
        %230 = vrot.lane.b32.xlu0 %v216, 1
        %v231 = vpop.permute.xlu0 %230
        %v233 = vsub.f32 %v216, %v231
        %v234 = vlaneseq
        %v235 = vshrl.u32 %v234, 7
        %v236 = vsub.s32 0, %v235
        %v237 = vrot.slane %v233, %v236
        %v238 = vsub.f32 %v237, %v228
        %v239 = vadd.f32 %v238, %v199
        %v240 = vrcp.pop %v239
        %v241 = vmul.f32 %v228, %v240
        %243 = vset.pattern.permute.xlu0 1
        %244 = vperm.xlu0 %243, %v241
        %v245 = vpop.permute.xlu0 %244
        %v248 = vlaneseq
        %v249 = vshrl.u32 %v248, 7
        %v250 = vsub.s32 0, %v249
        %v251 = vrot.slane %v204, %v250
        %vm253 = vcmp.gt.f32.partialorder %v245, %v251
        %v254 = vsel %vm203, 1, 0
        %vm255 = vcmp.eq.s32.totalorder %v254, 1
        %vm256 = vmand %vm253, %vm255
        %vm257 = vcmp.lt.f32.partialorder %v213, 0.5
        %vm258 = vmand %vm256, %vm257
        %v259 = vsel %vm258, %v201, 8
        %v260 = vsel %vm205, %v259, 2147483647
        %v261 = vrot.slane %v260, 4
        %vm262 = vcmp.lt.s32.totalorder %v260, %v261
        %v263 = vsel %vm262, %v260, %v261
        %v264 = vrot.slane %v263, 2
        %vm265 = vcmp.lt.s32.totalorder %v263, %v264
        %v266 = vsel %vm265, %v263, %v264
        %v267 = vrot.slane %v266, 1
        %vm268 = vcmp.lt.s32.totalorder %v266, %v267
        %v269 = vsel %vm268, %v266, %v267
        %vm270 = vcmp.eq.s32.totalorder %v201, %v269
        %v271 = vsel %vm270, 1.0, 0.0
        %v272 = vmax.f32 %v213, %v271
        %vm273 = vcmp.lt.s32.totalorder %v269, 8
        %v274 = vsel %vm273, 1.0, 0.0
        %s275 = scalar_lea.vmem %s189, %s208
        %vm276 = vcmask 8192
        %277 = vst.msk [vmem:[%s275] sm:$0x1] %vm276, %v274
      $region37: #{tpu_custom_call.1} parent=31 // loop_footer
        %s210 = sadd.s32 %s208, 1
      $region38: #{tpu_custom_call.1} parent=31 // loop_footer_branch
        %207 = sbr.rel target = $region34
      $region39: #{tpu_custom_call.1} parent=31 // loop_exit
        _
      %p278 = scmp.lt.s32.totalorder %s21, 1
      %s279 = scalar_select %p278, %s21, 1
      %s280 = smul.addr %s279, 8
      %s281 = scalar_lea.vmem %s4, %s280
      // Predicated region
      $region40: #{tpu_custom_call.1} parent=31 // pred_check
        %p282 = pneg %p112
      $region41: #{tpu_custom_call.1} parent=31 // pred_check_branch
        %284 = sbr.rel (%p282) target = $region43
      $region42: #{tpu_custom_call.1} parent=31 // pred_region
        _
      $region43: #{tpu_custom_call.1} parent=31 // pred_fallthru
        _
    $region32: #{tpu_custom_call.1} parent=5 // pred_fallthru
      _
    %p285 = scmp.le.s32.totalorder 2, %s16
    // Predicated region
    $region44: #{tpu_custom_call.1} parent=5 // pred_check
      %p286 = pneg %p285
    $region45: #{tpu_custom_call.1} parent=5 // pred_check_branch
      %288 = sbr.rel (%p286) target = $region47
    $region46: #{tpu_custom_call.1} parent=5 // pred_region
      %s289 = ssub.s32 %s16, 2
      // Predicated region
      $region48: #{tpu_custom_call.1} parent=46 // pred_check
        %p290 = pneg %p118
      $region49: #{tpu_custom_call.1} parent=46 // pred_check_branch
        %292 = sbr.rel (%p290) target = $region51
      $region50: #{tpu_custom_call.1} parent=46 // pred_region
        %p293 = scmp.lt.s32.totalorder %s22, 1
        %s294 = scalar_select %p293, %s22, 1
        %s295 = smul.addr %s294, 8
        %s296 = scalar_lea.vmem %s4, %s295
      $region51: #{tpu_custom_call.1} parent=46 // pred_fallthru
        _
    $region47: #{tpu_custom_call.1} parent=5 // pred_fallthru
      _
  $region6: #{tpu_custom_call.1} parent=0 // loop_footer
    %s20 = sadd.s32 1, %s16
  $region7: #{tpu_custom_call.1} parent=0 // loop_footer_branch
    %15 = sbr.rel target = $region3
  $region8: #{tpu_custom_call.1} parent=0 // loop_exit
    _

</llo_original>
